<compile_context>
chip_gen: v6e
topology: v6e:2x2x1
jax: 0.10.0
libtpu: 0.0.40
codegen_flags: <defaults>
</compile_context>

<pallas_src>
import functools

import jax
import jax.numpy as jnp
import numpy as np
from jax import lax
from jax.experimental import pallas as pl
from jax.experimental.pallas import tpu as pltpu


def _dynamic_conv_kernel(x_ref, rw_ref, rb_ref, ew_ref, mask_ref, out_ref, *, inv_hw):
    """Fused kernel for one batch tile.

    x_ref   : (TB, C, HWp)        activations (spatial flattened, lane-padded), native dtype
    rw_ref  : (C, E)              routing linear weight (transposed vs torch nn.Linear)
    rb_ref  : (1, E)              routing linear bias
    ew_ref  : (E, O, C)           CondConv2d expert weights (1x1 kernels)
    mask_ref: (TB*O, TB*C)        0/1 block-diagonal mask = kron(I_TB, ones(O, C))
    out_ref : (TB, O, HWp)        output tile
    inv_hw  : 1 / (H*W)           true spatial size (padding-safe mean)
    """
    tb, c, hwp = x_ref.shape
    o = out_ref.shape[1]

    x = x_ref[...]                                              # (TB, C, HWp), native dtype

    # adaptive_avg_pool2d(x, 1).flatten(1): sum over the TRUE spatial extent.
    # Padded spatial columns are zero, so sum * (1/HW_true) is exact.
    pooled = jnp.sum(x, axis=2, dtype=jnp.float32) * inv_hw     # (TB, C) f32

    # Routing: sigmoid(pooled @ W_r^T + b_r), batched over the tile (tiny matmul).
    logits = jnp.dot(pooled, rw_ref[...].astype(jnp.float32),
                     preferred_element_type=jnp.float32)        # (TB, E)
    routing = jax.nn.sigmoid(logits + rb_ref[...].astype(jnp.float32))

    # Combine expert 1x1 kernels per sample: (TB,E) x (E,O,C) -> (TB,O,C)  (tiny).
    w = lax.dot_general(
        routing, ew_ref[...].astype(jnp.float32),
        dimension_numbers=(((1,), (0,)), ((), ())),
        preferred_element_type=jnp.float32)                     # (TB, O, C)

    # Embed the per-sample kernels into a block-diagonal matrix so the whole tile's 1x1 conv
    # is ONE lane-dense MXU matmul (no serial per-sample matmul loop / batched dot_general).
    w_oc = w.reshape(tb * o, c)                                 # layout-free when O % 8 == 0
    if tb > 1:
        w_oc = jnp.concatenate([w_oc] * tb, axis=1)             # (TB*O, TB*C) lane replicate
    w_bd = (w_oc * mask_ref[...]).astype(x.dtype)               # zero off-diagonal blocks

    x2d = x.reshape(tb * c, hwp)                                # layout-free when C % 8 == 0
    out2d = jnp.dot(w_bd, x2d,
                    preferred_element_type=jnp.float32)         # (TB*O, HWp), f32 accumulate

    out_ref[...] = out2d.reshape(tb, o, hwp).astype(out_ref.dtype)


def dynamic_conv(x_nchw, routing_w_t, routing_b, expert_w, *, batch_tile=None):
    """x_nchw: (B,C,H,W); routing_w_t: (C,E); routing_b: (E,); expert_w: (E,O,C)."""
    B, C, H, W = x_nchw.shape
    E, O, C2 = expert_w.shape
    assert C2 == C and routing_w_t.shape == (C, E) and routing_b.shape == (E,)

    HW = H * W
    HW_pad = max(128, ((HW + 127) // 128) * 128)                # lane-dense output slab
    in_isz = jnp.dtype(x_nchw.dtype).itemsize
    out_dtype = x_nchw.dtype
    out_isz = jnp.dtype(out_dtype).itemsize

    # ---- generation-aware VMEM budget (v5e/v6e: 128 MiB, v7x: 64 MiB per TensorCore) ----
    try:
        info = pltpu.get_tpu_info()
        vmem_phys = int(getattr(info, "vmem_capacity_bytes", 64 * 1024 * 1024))
    except Exception:  # pragma: no cover - conservative fallback
        vmem_phys = 64 * 1024 * 1024
    # Per-sample, per-step bytes: double-buffered x & out blocks + the f32 accumulator.
    per_sample = 2 * (C * HW_pad * in_isz + O * HW_pad * out_isz) + O * HW_pad * 4
    budget = int(vmem_phys * 0.4)                               # headroom for weights / spills

    if batch_tile is None:
        TB = max(1, min(B, 32, budget // max(1, per_sample)))   # 32 bounds the block-diag K=TB*C
        if B >= 2:
            # >= 2 grid steps: real pipelining and v7x megacore split across the batch axis.
            TB = min(TB, (B + 1) // 2)
    else:
        TB = max(1, min(batch_tile, B))
    B_pad = ((B + TB - 1) // TB) * TB

    x = x_nchw.reshape(B, C, HW)
    if B_pad != B or HW_pad != HW:
        x = jnp.pad(x, ((0, B_pad - B), (0, 0), (0, HW_pad - HW)))

    rb = routing_b.reshape(1, E)
    # 0/1 block-diagonal mask selecting sample t's own channels: kron(I_TB, ones(O, C)).
    mask = jnp.kron(jnp.eye(TB, dtype=jnp.float32), jnp.ones((O, C), dtype=jnp.float32))

    kernel = functools.partial(_dynamic_conv_kernel, inv_hw=float(1.0 / HW))
    vmem_limit = max(32 * 1024 * 1024, int(vmem_phys * 0.7))    # ~90 MiB on 128 MiB chips, ~45 MiB on v7x

    out = pl.pallas_call(
        kernel,
        out_shape=jax.ShapeDtypeStruct((B_pad, O, HW_pad), out_dtype),
        grid_spec=pltpu.PrefetchScalarGridSpec(
            num_scalar_prefetch=0,
            grid=(B_pad // TB,),
            in_specs=[
                pl.BlockSpec((TB, C, HW_pad), lambda b: (b, 0, 0)),
                # Grid-invariant weight blocks: constant block index -> fetched once.
                pl.BlockSpec((C, E), lambda b: (0, 0)),
                pl.BlockSpec((1, E), lambda b: (0, 0)),
                pl.BlockSpec((E, O, C), lambda b: (0, 0, 0)),
                pl.BlockSpec((TB * O, TB * C), lambda b: (0, 0)),
            ],
            out_specs=pl.BlockSpec((TB, O, HW_pad), lambda b: (b, 0, 0)),
        ),
        compiler_params=pltpu.CompilerParams(
            dimension_semantics=("parallel",),
            vmem_limit_bytes=vmem_limit,
        ),
    )(x, routing_w_t, rb, expert_w, mask)

    return out[:B, :, :HW].reshape(B, O, H, W)


def dynamic_conv_reference(x_nchw, routing_w_t, routing_b, expert_w):
    """Pure-JAX reference matching the PyTorch module semantics (k=1, groups=1, bias=False)."""
    pooled = jnp.mean(x_nchw, axis=(2, 3))                      # (B, C)
    routing = jax.nn.sigmoid(pooled @ routing_w_t + routing_b)  # (B, E)
    w = jnp.einsum("be,eoc->boc", routing, expert_w)            # per-sample combined 1x1 weights
    return jnp.einsum("boc,bchw->bohw", w, x_nchw)              # per-sample 1x1 conv


if __name__ == "__main__":
    # Small shapes consistent with the module: in_features=8, out_features=16, num_experts=4
    B, C_in, H, W = 2, 8, 16, 16
    C_out, E = 16, 4

    key = jax.random.PRNGKey(0)
    kx, kw_r, kb_r, kw_e = jax.random.split(key, 4)

    x = jax.random.normal(kx, (B, C_in, H, W), dtype=jnp.float32)

    # nn.Linear(in_features, num_experts): weight (E, C_in), bias (E,).  Stored transposed.
    routing_w_t = (jax.random.normal(kw_r, (E, C_in), dtype=jnp.float32) * 0.1).T  # (C_in, E)
    routing_b = jax.random.normal(kb_r, (E,), dtype=jnp.float32) * 0.1

    # CondConv2d weight with k=1: (E, out_ch, in_ch)
    expert_w = jax.random.normal(kw_e, (E, C_out, C_in), dtype=jnp.float32) * 0.1

    out = dynamic_conv(x, routing_w_t, routing_b, expert_w)
    out = jax.block_until_ready(out)

    ref = dynamic_conv_reference(x, routing_w_t, routing_b, expert_w)
    np.testing.assert_allclose(np.asarray(out), np.asarray(ref), rtol=1e-4, atol=1e-4)

    print("KERNEL_OK")
</pallas_src>

<mosaic_0001>
module attributes {stable_mosaic.version = 11 : i64} {
  func.func @_dynamic_conv_kernel(%arg0: i32, %arg1: memref<1x8x256xf32, #tpu.memory_space<vmem>>, %arg2: memref<8x4xf32, #tpu.memory_space<vmem>>, %arg3: memref<1x4xf32, #tpu.memory_space<vmem>>, %arg4: memref<4x16x8xf32, #tpu.memory_space<vmem>>, %arg5: memref<16x8xf32, #tpu.memory_space<vmem>>, %arg6: memref<1x16x256xf32, #tpu.memory_space<vmem>>) attributes {dimension_semantics = [#tpu.dimension_semantics<parallel>], iteration_bounds = array<i64: 2>, scalar_prefetch = 0 : i64, scratch_operands = 0 : i64, tpu.core_type = #tpu.core_type<tc>, window_params = [{transform_indices = @transform_0, window_bounds = array<i64: 1, 8, 256>}, {pipeline_mode = #tpu.pipeline_mode<synchronous>, transform_indices = @transform_1, window_bounds = array<i64: 8, 4>}, {pipeline_mode = #tpu.pipeline_mode<synchronous>, transform_indices = @transform_2, window_bounds = array<i64: 1, 4>}, {pipeline_mode = #tpu.pipeline_mode<synchronous>, transform_indices = @transform_3, window_bounds = array<i64: 4, 16, 8>}, {pipeline_mode = #tpu.pipeline_mode<synchronous>, transform_indices = @transform_4, window_bounds = array<i64: 16, 8>}, {transform_indices = @transform_5, window_bounds = array<i64: 1, 16, 256>}]} {
    %c0 = arith.constant 0 : index
    %c0_0 = arith.constant 0 : index
    %c0_1 = arith.constant 0 : index
    %0 = vector.load %arg1[%c0, %c0_0, %c0_1] : memref<1x8x256xf32, #tpu.memory_space<vmem>>, vector<1x8x256xf32>
    %cst = arith.constant dense<0.000000e+00> : vector<1x8xf32>
    %1 = vector.multi_reduction <add>, %0, %cst [2] : vector<1x8x256xf32> to vector<1x8xf32>
    %cst_2 = arith.constant 3.906250e-03 : f32
    %2 = vector.broadcast %cst_2 : f32 to vector<1x8xf32>
    %3 = arith.mulf %1, %2 : vector<1x8xf32>
    %c0_3 = arith.constant 0 : index
    %c0_4 = arith.constant 0 : index
    %4 = vector.load %arg2[%c0_3, %c0_4] : memref<8x4xf32, #tpu.memory_space<vmem>>, vector<8x4xf32>
    %cst_5 = arith.constant dense<0.000000e+00> : vector<1x4xf32>
    %5 = tpu.matmul %3, %4, %cst_5 {dimension_numbers = #tpu.dot_dimension_numbers<[1], [0], [0], [1], [0, 0, 1, 1], [], []>} : vector<1x8xf32>, vector<8x4xf32>, vector<1x4xf32> -> vector<1x4xf32>
    %c0_6 = arith.constant 0 : index
    %c0_7 = arith.constant 0 : index
    %6 = vector.load %arg3[%c0_6, %c0_7] : memref<1x4xf32, #tpu.memory_space<vmem>>, vector<1x4xf32>
    %7 = arith.addf %5, %6 : vector<1x4xf32>
    %8 = arith.negf %7 : vector<1x4xf32>
    %9 = math.exp %8 : vector<1x4xf32>
    %cst_8 = arith.constant 1.000000e+00 : f32
    %10 = vector.broadcast %cst_8 : f32 to vector<1x4xf32>
    %11 = arith.addf %10, %9 : vector<1x4xf32>
    %12 = arith.divf %10, %11 : vector<1x4xf32>
    %c0_9 = arith.constant 0 : index
    %c0_10 = arith.constant 0 : index
    %c0_11 = arith.constant 0 : index
    %13 = vector.load %arg4[%c0_9, %c0_10, %c0_11] : memref<4x16x8xf32, #tpu.memory_space<vmem>>, vector<4x16x8xf32>
    %cst_12 = arith.constant dense<0.000000e+00> : vector<1x16x8xf32>
    %14 = tpu.matmul %12, %13, %cst_12 {dimension_numbers = #tpu.dot_dimension_numbers<[1], [0], [0], [1, 2], [0, 0, 1, 1, 1, 2], [], []>} : vector<1x4xf32>, vector<4x16x8xf32>, vector<1x16x8xf32> -> vector<1x16x8xf32>
    %15 = vector.shape_cast %14 : vector<1x16x8xf32> to vector<16x8xf32>
    %c0_13 = arith.constant 0 : index
    %c0_14 = arith.constant 0 : index
    %16 = vector.load %arg5[%c0_13, %c0_14] : memref<16x8xf32, #tpu.memory_space<vmem>>, vector<16x8xf32>
    %17 = arith.mulf %15, %16 : vector<16x8xf32>
    %18 = vector.shape_cast %0 : vector<1x8x256xf32> to vector<8x256xf32>
    %cst_15 = arith.constant dense<0.000000e+00> : vector<16x256xf32>
    %19 = tpu.matmul %17, %18, %cst_15 {dimension_numbers = #tpu.dot_dimension_numbers<[1], [0], [0], [1], [0, 0, 1, 1], [], []>} : vector<16x8xf32>, vector<8x256xf32>, vector<16x256xf32> -> vector<16x256xf32>
    %20 = vector.shape_cast %19 : vector<16x256xf32> to vector<1x16x256xf32>
    %c0_16 = arith.constant 0 : index
    %c0_17 = arith.constant 0 : index
    %c0_18 = arith.constant 0 : index
    %21 = vector.load %arg6[%c0_16, %c0_17, %c0_18] : memref<1x16x256xf32, #tpu.memory_space<vmem>>, vector<1x16x256xf32>
    tpu.vector_store %arg6[%c0_16, %c0_17, %c0_18], %20 {strides = array<i32>} : memref<1x16x256xf32, #tpu.memory_space<vmem>>, vector<1x16x256xf32>,
    return
  }
  func.func @transform_0(%arg0: i32) -> (i32, i32, i32) {
    %c0_i32 = arith.constant 0 : i32
    %c0_i32_0 = arith.constant 0 : i32
    %c0_i32_1 = arith.constant 0 : i32
    return %arg0, %c0_i32, %c0_i32_0 : i32, i32, i32
  }
  func.func @transform_1(%arg0: i32) -> (i32, i32) {
    %c0_i32 = arith.constant 0 : i32
    %c0_i32_0 = arith.constant 0 : i32
    %c0_i32_1 = arith.constant 0 : i32
    return %c0_i32, %c0_i32_0 : i32, i32
  }
  func.func @transform_2(%arg0: i32) -> (i32, i32) {
    %c0_i32 = arith.constant 0 : i32
    %c0_i32_0 = arith.constant 0 : i32
    %c0_i32_1 = arith.constant 0 : i32
    return %c0_i32, %c0_i32_0 : i32, i32
  }
  func.func @transform_3(%arg0: i32) -> (i32, i32, i32) {
    %c0_i32 = arith.constant 0 : i32
    %c0_i32_0 = arith.constant 0 : i32
    %c0_i32_1 = arith.constant 0 : i32
    %c0_i32_2 = arith.constant 0 : i32
    return %c0_i32, %c0_i32_0, %c0_i32_1 : i32, i32, i32
  }
  func.func @transform_4(%arg0: i32) -> (i32, i32) {
    %c0_i32 = arith.constant 0 : i32
    %c0_i32_0 = arith.constant 0 : i32
    %c0_i32_1 = arith.constant 0 : i32
    return %c0_i32, %c0_i32_0 : i32, i32
  }
  func.func @transform_5(%arg0: i32) -> (i32, i32, i32) {
    %c0_i32 = arith.constant 0 : i32
    %c0_i32_0 = arith.constant 0 : i32
    %c0_i32_1 = arith.constant 0 : i32
    return %arg0, %c0_i32, %c0_i32_0 : i32, i32, i32
  }
}

</mosaic_0001>

<llo_original>
// kernel: tpu_custom_call.1
$region0: #{tpu_custom_call.1}
  #allocation0 [shape = 'u32[]', space=smem, size = 0x4, offset = 0x4, fixed_abs, tag = 'smem constant byte address 0x4 - core index']
  #allocation1 [shape = 'u32[144,128]{1,0:T(1,128)}', space=vmem, size = 0x12000, scoped, tag = 'internal scratch']
  %s0 = inlined_call_operand.vmem [shape: f32[2,8,256], index: 0, kind: input, shape index: {}]
  %s1 = inlined_call_operand.vmem [shape: f32[8,4], index: 1, kind: input, shape index: {}]
  %s2 = inlined_call_operand.vmem [shape: f32[1,4], index: 2, kind: input, shape index: {}]
  %s3 = inlined_call_operand.vmem [shape: f32[4,16,8], index: 3, kind: input, shape index: {}]
  %s4 = inlined_call_operand.vmem [shape: f32[16,8], index: 4, kind: input, shape index: {}]
  %s5 = inlined_call_operand.hbm [shape: f32[2,16,256], index: 5, kind: output, shape index: {}]
  %s6 = sld [smem:[#allocation0]]
  $region53: #{tpu_custom_call.1} parent=0
    _
  %s8 = ssub.s32 1, %s6
  %s9 = scalar_select 0, %s8, %s6
  $region1: #{tpu_custom_call.1} parent=0
    #allocation2 [shape = 'u8[32768]{0}', space=vmem, size = 0x8000, scoped, tag = 'output window, operand 0']
    #allocation3 [shape = 's32[2]{0}', space=sflag, size = 0x8, scoped, tag = 'scoped memory for tpu_custom_call.1']
    %10 = vsyncpa [#allocation3], 0
    %s11 = scalar_lea.sflag [#allocation3], 1
    %12 = vsyncpa %s11, 0
    loop: start=0, step=1, limit=4
    $region2: #{tpu_custom_call.1} parent=1 // loop_pre_header
      _
    $region3: #{tpu_custom_call.1} parent=1 // loop_header
      %s14 = sphi 0, %s18
      %p15 = scmp.ge.s32.totalorder %s14, 4
      %s24 = sphi 0, %s26
      %s27 = sphi 0, %s24
      %s28 = sphi 0, %s27
      %s44 = sphi 0, %s28
      %s48 = sphi 0, %s48
      %s50 = sphi 0, %s48
      %s51 = sphi 0, %s50
      %s65 = sphi 0, %s51
      %s69 = sphi 0, %s69
      %s71 = sphi 0, %s69
      %s72 = sphi 0, %s71
      %s86 = sphi 0, %s72
      %s90 = sphi 0, %s90
      %s92 = sphi 0, %s90
      %s93 = sphi 0, %s92
      %s107 = sphi 0, %s93
      %s111 = sphi 0, %s111
      %s113 = sphi 0, %s111
      %s114 = sphi 0, %s113
      %s128 = sphi 0, %s114
      %s134 = sphi 0, %s136
      %s137 = sphi 0, %s134
      %s138 = sphi 0, %s137
      %s154 = sphi 0, %s138
    $region4: #{tpu_custom_call.1} parent=1 // loop_header_branch
      %17 = sbr.rel (%p15) target = $region8
    $region5: #{tpu_custom_call.1} parent=1 // loop_body
      %s19 = ssub.s32 %s14, 1
      %s20 = ssub.s32 %s14, 2
      %s21 = sadd.s32 %s14, 1
      %s22 = ssub.s32 %s14, %s21
      %p23 = scmp.eq.s32.totalorder %s22, 0
      %s25 = sadd.s32 %s24, 1
      %s26 = scalar_select %p23, %s24, %s25
      %p29 = pneg %p23
      %p30 = scmp.eq.s32.totalorder %s14, 1
      %p31 = por %p29, %p30
      %p32 = scmp.ne.s32.totalorder %s24, %s27
      %p33 = scmp.eq.s32.totalorder %s14, 0
      %p34 = por %p32, %p33
      %p35 = scmp.ne.s32.totalorder %s24, %s27
      %p36 = scmp.eq.s32.totalorder %s19, 1
      %p37 = por %p35, %p36
      %p38 = scmp.ne.s32.totalorder %s27, %s28
      %p39 = scmp.eq.s32.totalorder %s19, 0
      %p40 = por %p38, %p39
      %p41 = scmp.ne.s32.totalorder %s27, %s28
      %p42 = scmp.eq.s32.totalorder %s20, 1
      %p43 = por %p41, %p42
      %p45 = scmp.ne.s32.totalorder %s28, %s44
      %p46 = scmp.eq.s32.totalorder %s20, 0
      %p47 = por %p45, %p46
      %s49 = sadd.s32 %s48, 1
      %p52 = scmp.eq.s32.totalorder %s14, 1
      %p53 = scmp.ne.s32.totalorder %s48, %s50
      %p54 = scmp.eq.s32.totalorder %s14, 0
      %p55 = por %p53, %p54
      %p56 = scmp.ne.s32.totalorder %s48, %s50
      %p57 = scmp.eq.s32.totalorder %s19, 1
      %p58 = por %p56, %p57
      %p59 = scmp.ne.s32.totalorder %s50, %s51
      %p60 = scmp.eq.s32.totalorder %s19, 0
      %p61 = por %p59, %p60
      %p62 = scmp.ne.s32.totalorder %s50, %s51
      %p63 = scmp.eq.s32.totalorder %s20, 1
      %p64 = por %p62, %p63
      %p66 = scmp.ne.s32.totalorder %s51, %s65
      %p67 = scmp.eq.s32.totalorder %s20, 0
      %p68 = por %p66, %p67
      %s70 = sadd.s32 %s69, 1
      %p73 = scmp.eq.s32.totalorder %s14, 1
      %p74 = scmp.ne.s32.totalorder %s69, %s71
      %p75 = scmp.eq.s32.totalorder %s14, 0
      %p76 = por %p74, %p75
      %p77 = scmp.ne.s32.totalorder %s69, %s71
      %p78 = scmp.eq.s32.totalorder %s19, 1
      %p79 = por %p77, %p78
      %p80 = scmp.ne.s32.totalorder %s71, %s72
      %p81 = scmp.eq.s32.totalorder %s19, 0
      %p82 = por %p80, %p81
      %p83 = scmp.ne.s32.totalorder %s71, %s72
      %p84 = scmp.eq.s32.totalorder %s20, 1
      %p85 = por %p83, %p84
      %p87 = scmp.ne.s32.totalorder %s72, %s86
      %p88 = scmp.eq.s32.totalorder %s20, 0
      %p89 = por %p87, %p88
      %s91 = sadd.s32 %s90, 1
      %p94 = scmp.eq.s32.totalorder %s14, 1
      %p95 = scmp.ne.s32.totalorder %s90, %s92
      %p96 = scmp.eq.s32.totalorder %s14, 0
      %p97 = por %p95, %p96
      %p98 = scmp.ne.s32.totalorder %s90, %s92
      %p99 = scmp.eq.s32.totalorder %s19, 1
      %p100 = por %p98, %p99
      %p101 = scmp.ne.s32.totalorder %s92, %s93
      %p102 = scmp.eq.s32.totalorder %s19, 0
      %p103 = por %p101, %p102
      %p104 = scmp.ne.s32.totalorder %s92, %s93
      %p105 = scmp.eq.s32.totalorder %s20, 1
      %p106 = por %p104, %p105
      %p108 = scmp.ne.s32.totalorder %s93, %s107
      %p109 = scmp.eq.s32.totalorder %s20, 0
      %p110 = por %p108, %p109
      %s112 = sadd.s32 %s111, 1
      %p115 = scmp.eq.s32.totalorder %s14, 1
      %p116 = scmp.ne.s32.totalorder %s111, %s113
      %p117 = scmp.eq.s32.totalorder %s14, 0
      %p118 = por %p116, %p117
      %p119 = scmp.ne.s32.totalorder %s111, %s113
      %p120 = scmp.eq.s32.totalorder %s19, 1
      %p121 = por %p119, %p120
      %p122 = scmp.ne.s32.totalorder %s113, %s114
      %p123 = scmp.eq.s32.totalorder %s19, 0
      %p124 = por %p122, %p123
      %p125 = scmp.ne.s32.totalorder %s113, %s114
      %p126 = scmp.eq.s32.totalorder %s20, 1
      %p127 = por %p125, %p126
      %p129 = scmp.ne.s32.totalorder %s114, %s128
      %p130 = scmp.eq.s32.totalorder %s20, 0
      %p131 = por %p129, %p130
      %s132 = ssub.s32 %s14, %s21
      %p133 = scmp.eq.s32.totalorder %s132, 0
      %s135 = sadd.s32 %s134, 1
      %s136 = scalar_select %p133, %s134, %s135
      %p139 = pneg %p133
      %p140 = scmp.eq.s32.totalorder %s14, 1
      %p141 = por %p139, %p140
      %p142 = scmp.ne.s32.totalorder %s134, %s137
      %p143 = scmp.eq.s32.totalorder %s14, 0
      %p144 = por %p142, %p143
      %p145 = scmp.ne.s32.totalorder %s134, %s137
      %p146 = scmp.eq.s32.totalorder %s19, 1
      %p147 = por %p145, %p146
      %p148 = scmp.ne.s32.totalorder %s137, %s138
      %p149 = scmp.eq.s32.totalorder %s19, 0
      %p150 = por %p148, %p149
      %p151 = scmp.ne.s32.totalorder %s137, %s138
      %p152 = scmp.eq.s32.totalorder %s20, 1
      %p153 = por %p151, %p152
      %p155 = scmp.ne.s32.totalorder %s138, %s154
      %p156 = scmp.eq.s32.totalorder %s20, 0
      %p157 = por %p155, %p156
      %p158 = scmp.le.s32.totalorder 1, %s14
      %p159 = scmp.lt.s32.totalorder %s14, 3
      %p160 = pnand %p158, %p159
      %p161 = pneg %p160
      // Predicated region
      $region9: #{tpu_custom_call.1} parent=5 // pred_check
        _
      $region10: #{tpu_custom_call.1} parent=5 // pred_check_branch
        %163 = sbr.rel (%p160) target = $region12
      $region11: #{tpu_custom_call.1} parent=5 // pred_region
        %s164 = ssub.s32 %s14, 1
        // Predicated region
        $region13: #{tpu_custom_call.1} parent=11 // pred_check
          %p165 = pneg %p61
        $region14: #{tpu_custom_call.1} parent=11 // pred_check_branch
          %167 = sbr.rel (%p165) target = $region16
        $region15: #{tpu_custom_call.1} parent=11 // pred_region
          _
        $region16: #{tpu_custom_call.1} parent=11 // pred_fallthru
          _
        // Predicated region
        $region17: #{tpu_custom_call.1} parent=11 // pred_check
          %p168 = pneg %p82
        $region18: #{tpu_custom_call.1} parent=11 // pred_check_branch
          %170 = sbr.rel (%p168) target = $region20
        $region19: #{tpu_custom_call.1} parent=11 // pred_region
          _
        $region20: #{tpu_custom_call.1} parent=11 // pred_fallthru
          _
        // Predicated region
        $region21: #{tpu_custom_call.1} parent=11 // pred_check
          %p171 = pneg %p103
        $region22: #{tpu_custom_call.1} parent=11 // pred_check_branch
          %173 = sbr.rel (%p171) target = $region24
        $region23: #{tpu_custom_call.1} parent=11 // pred_region
          _
        $region24: #{tpu_custom_call.1} parent=11 // pred_fallthru
          _
        // Predicated region
        $region25: #{tpu_custom_call.1} parent=11 // pred_check
          %p174 = pneg %p124
        $region26: #{tpu_custom_call.1} parent=11 // pred_check_branch
          %176 = sbr.rel (%p174) target = $region28
        $region27: #{tpu_custom_call.1} parent=11 // pred_region
          _
        $region28: #{tpu_custom_call.1} parent=11 // pred_fallthru
          _
      $region12: #{tpu_custom_call.1} parent=5 // pred_fallthru
        _
      %p177 = scmp.lt.s32.totalorder %s14, 2
      // Predicated region
      $region29: #{tpu_custom_call.1} parent=5 // pred_check
        %p178 = pneg %p177
      $region30: #{tpu_custom_call.1} parent=5 // pred_check_branch
        %180 = sbr.rel (%p178) target = $region32
      $region31: #{tpu_custom_call.1} parent=5 // pred_region
        // Predicated region
        $region33: #{tpu_custom_call.1} parent=31 // pred_check
          %p181 = pneg %p34
        $region34: #{tpu_custom_call.1} parent=31 // pred_check_branch
          %183 = sbr.rel (%p181) target = $region36
        $region35: #{tpu_custom_call.1} parent=31 // pred_region
          %p184 = scmp.lt.s32.totalorder %s14, 1
          %s185 = scalar_select %p184, %s14, 1
          %s186 = smul.addr %s185, 2
          %s187 = smul.addr %s186, 8
          %s188 = scalar_lea.vmem %s0, %s187
        $region36: #{tpu_custom_call.1} parent=31 // pred_fallthru
          _
      $region32: #{tpu_custom_call.1} parent=5 // pred_fallthru
        _
      %p189 = scmp.le.s32.totalorder 1, %s14
      %p190 = scmp.lt.s32.totalorder %s14, 3
      %p191 = pnand %p189, %p190
      %p192 = pneg %p191
      // Predicated region
      $region37: #{tpu_custom_call.1} parent=5 // pred_check
        _
      $region38: #{tpu_custom_call.1} parent=5 // pred_check_branch
        %194 = sbr.rel (%p191) target = $region40
      $region39: #{tpu_custom_call.1} parent=5 // pred_region
        %s195 = ssub.s32 %s14, 1
        %p196 = scmp.lt.s32.totalorder %s19, 1
        %s197 = scalar_select %p196, %s19, 1
        %s198 = smul.addr %s197, 2
        %s199 = smul.addr %s198, 8
        %s200 = scalar_lea.vmem %s0, %s199
        %p201 = pneg %p40
        %p202 = pneg %p37
        %p203 = pneg %p61
        %p204 = pneg %p58
        %p205 = pneg %p82
        %p206 = pneg %p79
        %p207 = pneg %p103
        %p208 = pneg %p100
        %p209 = pneg %p124
        %p210 = pneg %p121
        %p211 = pneg %p150
        %p212 = pneg %p147
        %s213 = sand.u32 %s137, 1
        %s214 = scalar_lea.sflag [#allocation3], %s213
        %s215 = sand.u32 %s137, 1
        %s216 = smul.addr %s215, 32
        %s217 = scalar_lea.vmem [#allocation2], %s216
        %p218 = scmp.lt.s32.totalorder %s19, 1
        %s219 = scalar_select %p218, %s19, 1
        %s220 = smul.addr %s219, 2
        %s221 = smul.addr %s220, 8
        %s222 = scalar_lea.vmem %s0, %s221
        %v223 = vld [vmem:[%s222] sm:$0xff]
        %v224 = vld [vmem:[%s222 + $0x8] sm:$0xff]
        %v225 = vadd.f32 %v223, %v224
        %226 = vadd.xlane.f32.xlu0 %v225
        %v227 = vpop.xlane.xlu0 %226
        %v228 = vmul.f32 %v227, 0.00390625
        %v229 = vld [vmem:[%s1] sm:$0xff]
        %v230 = vld [vmem:[%s2] sm:$0x1]
        %v232 = vlaneseq
        %v233 = vand.u32 %v232, 127
        %v234 = vlaneseq
        %v235 = vshrl.u32 %v234, 7
        %v236 = vsub.s32 %v233, %v235
        %v237 = vrot.slane %v228, %v236
        %vm238 = vcmask 64512
        %v239 = vsel %vm238, %v237, 0
        %241 = vmatprep.subr.mxu0 0.0
        %242 = vmatpush1.msra.mxu0 0.0
        %243 = vmatprep.subr.mxu0 0.0
        %244 = vmatpush1.msra.mxu0 0.0
        %245 = vmatprep.subr.mxu0 0.0
        %246 = vmatpush1.msra.mxu0 0.0
        %247 = vmatprep.subr.mxu0 0.0
        %248 = vmatpush1.msra.mxu0 0.0
        %249 = vmatprep.subr.mxu0 0.0
        %250 = vmatpush1.msra.mxu0 0.0
        %251 = vmatprep.subr.mxu0 0.0
        %252 = vmatpush1.msra.mxu0 0.0
        %253 = vmatprep.subr.mxu0 0.0
        %254 = vmatpush1.msra.mxu0 0.0
        %255 = vmatprep.subr.mxu0 0.0
        %256 = vmatpush1.msra.mxu0 0.0
        %257 = vmatprep.subr.mxu0 0.0
        %258 = vmatpush1.msra.mxu0 0.0
        %259 = vmatprep.subr.mxu0 0.0
        %260 = vmatpush1.msra.mxu0 0.0
        %261 = vmatprep.subr.mxu0 0.0
        %262 = vmatpush1.msra.mxu0 0.0
        %263 = vmatprep.subr.mxu0 0.0
        %264 = vmatpush1.msra.mxu0 0.0
        %265 = vmatprep.subr.mxu0 0.0
        %266 = vmatpush1.msra.mxu0 0.0
        %267 = vmatprep.subr.mxu0 0.0
        %268 = vmatpush1.msra.mxu0 0.0
        %269 = vmatprep.subr.mxu0 0.0
        %270 = vmatpush1.msra.mxu0 0.0
        %271 = vmatprep.subr.mxu0 0.0
        %272 = vmatpush1.msra.mxu0 %v229
        %273 = vmatprep.subr.mxu0 0.0
        %274 = vmatpush2.msra.mxu0 0.0
        %275 = vmatprep.subr.mxu0 0.0
        %276 = vmatpush2.msra.mxu0 0.0
        %277 = vmatprep.subr.mxu0 0.0
        %278 = vmatpush2.msra.mxu0 0.0
        %279 = vmatprep.subr.mxu0 0.0
        %280 = vmatpush2.msra.mxu0 0.0
        %281 = vmatprep.subr.mxu0 0.0
        %282 = vmatpush2.msra.mxu0 0.0
        %283 = vmatprep.subr.mxu0 0.0
        %284 = vmatpush2.msra.mxu0 0.0
        %285 = vmatprep.subr.mxu0 0.0
        %286 = vmatpush2.msra.mxu0 0.0
        %287 = vmatprep.subr.mxu0 0.0
        %288 = vmatpush2.msra.mxu0 0.0
        %289 = vmatprep.subr.mxu0 0.0
        %290 = vmatpush2.msra.mxu0 0.0
        %291 = vmatprep.subr.mxu0 0.0
        %292 = vmatpush2.msra.mxu0 0.0
        %293 = vmatprep.subr.mxu0 0.0
        %294 = vmatpush2.msra.mxu0 0.0
        %295 = vmatprep.subr.mxu0 0.0
        %296 = vmatpush2.msra.mxu0 0.0
        %297 = vmatprep.subr.mxu0 0.0
        %298 = vmatpush2.msra.mxu0 0.0
        %299 = vmatprep.subr.mxu0 0.0
        %300 = vmatpush2.msra.mxu0 0.0
        %301 = vmatprep.subr.mxu0 0.0
        %302 = vmatpush2.msra.mxu0 0.0
        %303 = vmatprep.subr.mxu0 0.0
        %304 = vmatpush2.msra.mxu0 0.0
        %305 = vmatprep.mubr.f32.mxu0 0.0
        %306 = vmatmul.mubr.f32.gmra.mxu0 %v239
        %v307 = vpop.f32.mrf.mxu0
        %v308 = vadd.f32 %v230, %v307
        %v309 = vpop.f32.mrf.mxu0
        %310 = vdwg.mxu0
        %v311 = vxor.u32 %v308, 2147483648
        %v312 = vmul.f32 %v311, 1.442695
        %v313 = vpow.pop %v312
        %v314 = vadd.f32 %v313, 1.0
        %v315 = vrcp.pop %v314
        %v316 = vmul.f32 1.0, %v315
        %v317 = vld [vmem:[%s3] sm:$0xff]
        %v318 = vld [vmem:[%s3 + $0x8] sm:$0xff]
        %v319 = vld [vmem:[%s3 + $0x10] sm:$0xff]
        %v320 = vld [vmem:[%s3 + $0x18] sm:$0xff]
        %v321 = vld [vmem:[%s3 + $0x20] sm:$0xff]
        %v322 = vld [vmem:[%s3 + $0x28] sm:$0xff]
        %v323 = vld [vmem:[%s3 + $0x30] sm:$0xff]
        %v324 = vld [vmem:[%s3 + $0x38] sm:$0xff]
        %v325 = vcombine.low %v317, %v321
        %v326 = vcombine.high %v317, %v321
        %v328 = vunpack.c.l.s4 1983009808
        %v329 = vunpack.c.0.s8 %v328
        %v330 = vlaneseq
        %v331 = vshrl.u32 %v330, 7
        %v332 = vsub.s32 %v329, %v331
        %v333 = vrot.slane %v325, %v332
        %v335 = vunpack.c.l.s4 1983009808
        %v336 = vunpack.c.0.s8 %v335
        %v337 = vlaneseq
        %v338 = vshrl.u32 %v337, 7
        %v339 = vsub.s32 %v336, %v338
        %v340 = vrot.slane %v326, %v339
        %v341 = vcombine.low %v319, %v323
        %v342 = vcombine.high %v319, %v323
        %v344 = vunpack.c.l.s4 1983009808
        %v345 = vunpack.c.0.s8 %v344
        %v346 = vlaneseq
        %v347 = vshrl.u32 %v346, 7
        %v348 = vsub.s32 %v345, %v347
        %v349 = vrot.slane %v341, %v348
        %v351 = vunpack.c.l.s4 1983009808
        %v352 = vunpack.c.0.s8 %v351
        %v353 = vlaneseq
        %v354 = vshrl.u32 %v353, 7
        %v355 = vsub.s32 %v352, %v354
        %v356 = vrot.slane %v342, %v355
        %v357 = vcombine.low %v333, %v349
        %v358 = vcombine.high %v333, %v349
        %v360 = vunpack.c.l.s4 1934713408
        %v361 = vunpack.c.0.s8 %v360
        %v362 = vlaneseq
        %v363 = vshrl.u32 %v362, 7
        %v364 = vsub.s32 %v361, %v363
        %v365 = vrot.slane %v357, %v364
        %v367 = vunpack.c.l.s4 1934713408
        %v368 = vunpack.c.0.s8 %v367
        %v369 = vlaneseq
        %v370 = vshrl.u32 %v369, 7
        %v371 = vsub.s32 %v368, %v370
        %v372 = vrot.slane %v358, %v371
        %v373 = vcombine.low %v340, %v356
        %v374 = vcombine.high %v340, %v356
        %v376 = vunpack.c.l.s4 1934713408
        %v377 = vunpack.c.0.s8 %v376
        %v378 = vlaneseq
        %v379 = vshrl.u32 %v378, 7
        %v380 = vsub.s32 %v377, %v379
        %v381 = vrot.slane %v373, %v380
        %v383 = vunpack.c.l.s4 1934713408
        %v384 = vunpack.c.0.s8 %v383
        %v385 = vlaneseq
        %v386 = vshrl.u32 %v385, 7
        %v387 = vsub.s32 %v384, %v386
        %v388 = vrot.slane %v374, %v387
        %v389 = vcombine.high %v365, 0.0
        %v390 = vcombine.high %v372, 0.0
        %v391 = vcombine.high %v381, 0.0
        %v392 = vcombine.high %v388, 0.0
        %v393 = vcombine.low %v318, %v322
        %v394 = vcombine.high %v318, %v322
        %v396 = vunpack.c.l.s4 1983009808
        %v397 = vunpack.c.0.s8 %v396
        %v398 = vlaneseq
        %v399 = vshrl.u32 %v398, 7
        %v400 = vsub.s32 %v397, %v399
        %v401 = vrot.slane %v393, %v400
        %v403 = vunpack.c.l.s4 1983009808
        %v404 = vunpack.c.0.s8 %v403
        %v405 = vlaneseq
        %v406 = vshrl.u32 %v405, 7
        %v407 = vsub.s32 %v404, %v406
        %v408 = vrot.slane %v394, %v407
        %v409 = vcombine.low %v320, %v324
        %v410 = vcombine.high %v320, %v324
        %v412 = vunpack.c.l.s4 1983009808
        %v413 = vunpack.c.0.s8 %v412
        %v414 = vlaneseq
        %v415 = vshrl.u32 %v414, 7
        %v416 = vsub.s32 %v413, %v415
        %v417 = vrot.slane %v409, %v416
        %v419 = vunpack.c.l.s4 1983009808
        %v420 = vunpack.c.0.s8 %v419
        %v421 = vlaneseq
        %v422 = vshrl.u32 %v421, 7
        %v423 = vsub.s32 %v420, %v422
        %v424 = vrot.slane %v410, %v423
        %v425 = vcombine.low %v401, %v417
        %v426 = vcombine.high %v401, %v417
        %v428 = vunpack.c.l.s4 1934713408
        %v429 = vunpack.c.0.s8 %v428
        %v430 = vlaneseq
        %v431 = vshrl.u32 %v430, 7
        %v432 = vsub.s32 %v429, %v431
        %v433 = vrot.slane %v425, %v432
        %v435 = vunpack.c.l.s4 1934713408
        %v436 = vunpack.c.0.s8 %v435
        %v437 = vlaneseq
        %v438 = vshrl.u32 %v437, 7
        %v439 = vsub.s32 %v436, %v438
        %v440 = vrot.slane %v426, %v439
        %v441 = vcombine.low %v408, %v424
        %v442 = vcombine.high %v408, %v424
        %v444 = vunpack.c.l.s4 1934713408
        %v445 = vunpack.c.0.s8 %v444
        %v446 = vlaneseq
        %v447 = vshrl.u32 %v446, 7
        %v448 = vsub.s32 %v445, %v447
        %v449 = vrot.slane %v441, %v448
        %v451 = vunpack.c.l.s4 1934713408
        %v452 = vunpack.c.0.s8 %v451
        %v453 = vlaneseq
        %v454 = vshrl.u32 %v453, 7
        %v455 = vsub.s32 %v452, %v454
        %v456 = vrot.slane %v442, %v455
        %v457 = vcombine.high %v433, 0.0
        %v458 = vcombine.high %v440, 0.0
        %v459 = vcombine.high %v449, 0.0
        %v460 = vcombine.high %v456, 0.0
        %462 = vrot.lane.b32.xlu0 %v389, 8
        %v463 = vpop.permute.xlu0 %462
        %466 = vrot.lane.b32.xlu0 %v372, 16
        %v467 = vpop.permute.xlu0 %466
        %470 = vrot.lane.b32.xlu0 %v390, 24
        %v471 = vpop.permute.xlu0 %470
        %474 = vrot.lane.b32.xlu0 %v381, 32
        %v475 = vpop.permute.xlu0 %474
        %478 = vrot.lane.b32.xlu0 %v391, 40
        %v479 = vpop.permute.xlu0 %478
        %482 = vrot.lane.b32.xlu0 %v388, 48
        %v483 = vpop.permute.xlu0 %482
        %486 = vrot.lane.b32.xlu0 %v392, 56
        %v487 = vpop.permute.xlu0 %486
        %490 = vrot.lane.b32.xlu0 %v433, 64
        %v491 = vpop.permute.xlu0 %490
        %494 = vrot.lane.b32.xlu0 %v457, 72
        %v495 = vpop.permute.xlu0 %494
        %498 = vrot.lane.b32.xlu0 %v440, 80
        %v499 = vpop.permute.xlu0 %498
        %502 = vrot.lane.b32.xlu0 %v458, 88
        %v503 = vpop.permute.xlu0 %502
        %506 = vrot.lane.b32.xlu0 %v449, 96
        %v507 = vpop.permute.xlu0 %506
        %510 = vrot.lane.b32.xlu0 %v459, 104
        %v511 = vpop.permute.xlu0 %510
        %514 = vrot.lane.b32.xlu0 %v456, 112
        %v515 = vpop.permute.xlu0 %514
        %518 = vrot.lane.b32.xlu0 %v460, 120
        %v519 = vpop.permute.xlu0 %518
        %v521 = vsel %vm238, %v365, %v463
        %vm522 = vcmask 130048
        %v523 = vsel %vm522, %v521, %v467
        %vm524 = vcmask 195584
        %v525 = vsel %vm524, %v523, %v471
        %vm526 = vcmask 261120
        %v527 = vsel %vm526, %v525, %v475
        %vm528 = vcmask 326656
        %v529 = vsel %vm528, %v527, %v479
        %vm530 = vcmask 392192
        %v531 = vsel %vm530, %v529, %v483
        %vm532 = vcmask 457728
        %v533 = vsel %vm532, %v531, %v487
        %vm534 = vcmask 523264
        %v535 = vsel %vm534, %v533, %v491
        %vm536 = vcmask 588800
        %v537 = vsel %vm536, %v535, %v495
        %vm538 = vcmask 654336
        %v539 = vsel %vm538, %v537, %v499
        %vm540 = vcmask 719872
        %v541 = vsel %vm540, %v539, %v503
        %vm542 = vcmask 785408
        %v543 = vsel %vm542, %v541, %v507
        %vm544 = vcmask 850944
        %v545 = vsel %vm544, %v543, %v511
        %vm546 = vcmask 916480
        %v547 = vsel %vm546, %v545, %v515
        %vm548 = vcmask 982016
        %v549 = vsel %vm548, %v547, %v519
        %v550 = vcombine.high 0.0, 0.0
        %v552 = vunpack.c.l.s4 1983009808
        %v553 = vunpack.c.0.s8 %v552
        %v554 = vlaneseq
        %v555 = vshrl.u32 %v554, 7
        %v556 = vsub.s32 %v553, %v555
        %v558 = vunpack.c.l.s4 1983009808
        %v559 = vunpack.c.0.s8 %v558
        %v560 = vlaneseq
        %v561 = vshrl.u32 %v560, 7
        %v562 = vsub.s32 %v559, %v561
        %v563 = vrot.slane %v550, %v562
        %v564 = vcombine.high 0.0, 0.0
        %v566 = vunpack.c.l.s4 1934713408
        %v567 = vunpack.c.0.s8 %v566
        %v568 = vlaneseq
        %v569 = vshrl.u32 %v568, 7
        %v570 = vsub.s32 %v567, %v569
        %v572 = vunpack.c.l.s4 1934713408
        %v573 = vunpack.c.0.s8 %v572
        %v574 = vlaneseq
        %v575 = vshrl.u32 %v574, 7
        %v576 = vsub.s32 %v573, %v575
        %v577 = vrot.slane %v564, %v576
        %v578 = vcombine.high %v563, 0.0
        %v580 = vunpack.c.l.s4 1934713408
        %v581 = vunpack.c.0.s8 %v580
        %v582 = vlaneseq
        %v583 = vshrl.u32 %v582, 7
        %v584 = vsub.s32 %v581, %v583
        %v585 = vrot.slane %v563, %v584
        %v587 = vunpack.c.l.s4 1934713408
        %v588 = vunpack.c.0.s8 %v587
        %v589 = vlaneseq
        %v590 = vshrl.u32 %v589, 7
        %v591 = vsub.s32 %v588, %v590
        %v592 = vrot.slane %v578, %v591
        %v593 = vcombine.high 0.0, 0.0
        %v594 = vcombine.high %v577, 0.0
        %v595 = vcombine.high %v585, 0.0
        %v596 = vcombine.high %v592, 0.0
        %598 = vrot.lane.b32.xlu0 %v593, 8
        %v599 = vpop.permute.xlu0 %598
        %602 = vrot.lane.b32.xlu0 %v577, 16
        %v603 = vpop.permute.xlu0 %602
        %606 = vrot.lane.b32.xlu0 %v594, 24
        %v607 = vpop.permute.xlu0 %606
        %610 = vrot.lane.b32.xlu0 %v585, 32
        %v611 = vpop.permute.xlu0 %610
        %614 = vrot.lane.b32.xlu0 %v595, 40
        %v615 = vpop.permute.xlu0 %614
        %618 = vrot.lane.b32.xlu0 %v592, 48
        %v619 = vpop.permute.xlu0 %618
        %622 = vrot.lane.b32.xlu0 %v596, 56
        %v623 = vpop.permute.xlu0 %622
        %626 = vrot.lane.b32.xlu0 0.0, 64
        %v627 = vpop.permute.xlu0 %626
        %629 = vrot.lane.b32.xlu0 %v593, 72
        %v630 = vpop.permute.xlu0 %629
        %632 = vrot.lane.b32.xlu0 %v577, 80
        %v633 = vpop.permute.xlu0 %632
        %635 = vrot.lane.b32.xlu0 %v594, 88
        %v636 = vpop.permute.xlu0 %635
        %638 = vrot.lane.b32.xlu0 %v585, 96
        %v639 = vpop.permute.xlu0 %638
        %641 = vrot.lane.b32.xlu0 %v595, 104
        %v642 = vpop.permute.xlu0 %641
        %644 = vrot.lane.b32.xlu0 %v592, 112
        %v645 = vpop.permute.xlu0 %644
        %647 = vrot.lane.b32.xlu0 %v596, 120
        %v648 = vpop.permute.xlu0 %647
        %v650 = vsel %vm238, 0.0, %v599
        %v651 = vsel %vm522, %v650, %v603
        %v652 = vsel %vm524, %v651, %v607
        %v653 = vsel %vm526, %v652, %v611
        %v654 = vsel %vm528, %v653, %v615
        %v655 = vsel %vm530, %v654, %v619
        %v656 = vsel %vm532, %v655, %v623
        %v657 = vsel %vm534, %v656, %v627
        %v658 = vsel %vm536, %v657, %v630
        %v659 = vsel %vm538, %v658, %v633
        %v660 = vsel %vm540, %v659, %v636
        %v661 = vsel %vm542, %v660, %v639
        %v662 = vsel %vm544, %v661, %v642
        %v663 = vsel %vm546, %v662, %v645
        %v664 = vsel %vm548, %v663, %v648
        %vm665 = vcmask 31744
        %v667 = vsel %vm665, %v316, 0
        %vm669 = vcmask 1043456
        %v671 = vsel %vm669, %v549, 0
        %673 = vmatprep.subr.mxu0 0.0
        %674 = vmatpush1.msra.mxu0 0.0
        %675 = vmatprep.subr.mxu0 0.0
        %676 = vmatpush1.msra.mxu0 0.0
        %677 = vmatprep.subr.mxu0 0.0
        %678 = vmatpush1.msra.mxu0 0.0
        %679 = vmatprep.subr.mxu0 0.0
        %680 = vmatpush1.msra.mxu0 0.0
        %681 = vmatprep.subr.mxu0 0.0
        %682 = vmatpush1.msra.mxu0 0.0
        %683 = vmatprep.subr.mxu0 0.0
        %684 = vmatpush1.msra.mxu0 0.0
        %685 = vmatprep.subr.mxu0 0.0
        %686 = vmatpush1.msra.mxu0 0.0
        %687 = vmatprep.subr.mxu0 0.0
        %688 = vmatpush1.msra.mxu0 0.0
        %689 = vmatprep.subr.mxu0 0.0
        %690 = vmatpush1.msra.mxu0 0.0
        %691 = vmatprep.subr.mxu0 0.0
        %692 = vmatpush1.msra.mxu0 0.0
        %693 = vmatprep.subr.mxu0 0.0
        %694 = vmatpush1.msra.mxu0 0.0
        %695 = vmatprep.subr.mxu0 0.0
        %696 = vmatpush1.msra.mxu0 0.0
        %697 = vmatprep.subr.mxu0 0.0
        %698 = vmatpush1.msra.mxu0 0.0
        %699 = vmatprep.subr.mxu0 0.0
        %700 = vmatpush1.msra.mxu0 0.0
        %701 = vmatprep.subr.mxu0 0.0
        %702 = vmatpush1.msra.mxu0 0.0
        %703 = vmatprep.subr.mxu0 0.0
        %704 = vmatpush1.msra.mxu0 %v671
        %705 = vmatprep.subr.mxu0 0.0
        %706 = vmatpush2.msra.mxu0 0.0
        %707 = vmatprep.subr.mxu0 0.0
        %708 = vmatpush2.msra.mxu0 0.0
        %709 = vmatprep.subr.mxu0 0.0
        %710 = vmatpush2.msra.mxu0 0.0
        %711 = vmatprep.subr.mxu0 0.0
        %712 = vmatpush2.msra.mxu0 0.0
        %713 = vmatprep.subr.mxu0 0.0
        %714 = vmatpush2.msra.mxu0 0.0
        %715 = vmatprep.subr.mxu0 0.0
        %716 = vmatpush2.msra.mxu0 0.0
        %717 = vmatprep.subr.mxu0 0.0
        %718 = vmatpush2.msra.mxu0 0.0
        %719 = vmatprep.subr.mxu0 0.0
        %720 = vmatpush2.msra.mxu0 0.0
        %721 = vmatprep.subr.mxu0 0.0
        %722 = vmatpush2.msra.mxu0 0.0
        %723 = vmatprep.subr.mxu0 0.0
        %724 = vmatpush2.msra.mxu0 0.0
        %725 = vmatprep.subr.mxu0 0.0
        %726 = vmatpush2.msra.mxu0 0.0
        %727 = vmatprep.subr.mxu0 0.0
        %728 = vmatpush2.msra.mxu0 0.0
        %729 = vmatprep.subr.mxu0 0.0
        %730 = vmatpush2.msra.mxu0 0.0
        %731 = vmatprep.subr.mxu0 0.0
        %732 = vmatpush2.msra.mxu0 0.0
        %733 = vmatprep.subr.mxu0 0.0
        %734 = vmatpush2.msra.mxu0 0.0
        %735 = vmatprep.subr.mxu0 0.0
        %736 = vmatpush2.msra.mxu0 0.0
        %737 = vmatprep.mubr.f32.mxu0 0.0
        %738 = vmatmul.mubr.f32.gmra.mxu0 %v667
        %v739 = vpop.f32.mrf.mxu0
        %v740 = vadd.f32 %v664, %v739
        %v741 = vpop.f32.mrf.mxu0
        %742 = vdwg.mxu0
        %744 = vrot.lane.b32.xlu0 %v740, 120
        %v745 = vpop.permute.xlu0 %744
        %747 = vrot.lane.b32.xlu0 %v740, 112
        %v748 = vpop.permute.xlu0 %747
        %750 = vrot.lane.b32.xlu0 %v740, 104
        %v751 = vpop.permute.xlu0 %750
        %753 = vrot.lane.b32.xlu0 %v740, 96
        %v754 = vpop.permute.xlu0 %753
        %756 = vrot.lane.b32.xlu0 %v740, 88
        %v757 = vpop.permute.xlu0 %756
        %759 = vrot.lane.b32.xlu0 %v740, 80
        %v760 = vpop.permute.xlu0 %759
        %762 = vrot.lane.b32.xlu0 %v740, 72
        %v763 = vpop.permute.xlu0 %762
        %765 = vrot.lane.b32.xlu0 %v740, 64
        %v766 = vpop.permute.xlu0 %765
        %768 = vrot.lane.b32.xlu0 %v740, 56
        %v769 = vpop.permute.xlu0 %768
        %771 = vrot.lane.b32.xlu0 %v740, 48
        %v772 = vpop.permute.xlu0 %771
        %774 = vrot.lane.b32.xlu0 %v740, 40
        %v775 = vpop.permute.xlu0 %774
        %777 = vrot.lane.b32.xlu0 %v740, 32
        %v778 = vpop.permute.xlu0 %777
        %780 = vrot.lane.b32.xlu0 %v740, 24
        %v781 = vpop.permute.xlu0 %780
        %783 = vrot.lane.b32.xlu0 %v740, 16
        %v784 = vpop.permute.xlu0 %783
        %786 = vrot.lane.b32.xlu0 %v740, 8
        %v787 = vpop.permute.xlu0 %786
        %v789 = vcombine.low %v740, %v748
        %v791 = vunpack.c.l.s4 1983009808
        %v792 = vunpack.c.0.s8 %v791
        %v793 = vlaneseq
        %v794 = vshrl.u32 %v793, 7
        %v795 = vsub.s32 %v792, %v794
        %v796 = vrot.slane %v789, %v795
        %v797 = vcombine.low %v745, %v751
        %v799 = vunpack.c.l.s4 1983009808
        %v800 = vunpack.c.0.s8 %v799
        %v801 = vlaneseq
        %v802 = vshrl.u32 %v801, 7
        %v803 = vsub.s32 %v800, %v802
        %v804 = vrot.slane %v797, %v803
        %v805 = vcombine.low %v754, %v760
        %v807 = vunpack.c.l.s4 1983009808
        %v808 = vunpack.c.0.s8 %v807
        %v809 = vlaneseq
        %v810 = vshrl.u32 %v809, 7
        %v811 = vsub.s32 %v808, %v810
        %v812 = vrot.slane %v805, %v811
        %v813 = vcombine.low %v757, %v763
        %v815 = vunpack.c.l.s4 1983009808
        %v816 = vunpack.c.0.s8 %v815
        %v817 = vlaneseq
        %v818 = vshrl.u32 %v817, 7
        %v819 = vsub.s32 %v816, %v818
        %v820 = vrot.slane %v813, %v819
        %v821 = vcombine.low %v796, %v804
        %v823 = vunpack.c.l.s4 1934713408
        %v824 = vunpack.c.0.s8 %v823
        %v825 = vlaneseq
        %v826 = vshrl.u32 %v825, 7
        %v827 = vsub.s32 %v824, %v826
        %v828 = vrot.slane %v821, %v827
        %v829 = vcombine.low %v812, %v820
        %v831 = vunpack.c.l.s4 1934713408
        %v832 = vunpack.c.0.s8 %v831
        %v833 = vlaneseq
        %v834 = vshrl.u32 %v833, 7
        %v835 = vsub.s32 %v832, %v834
        %v836 = vrot.slane %v829, %v835
        %v837 = vcombine.low %v828, %v836
        %v838 = vcombine.low %v766, %v772
        %v840 = vunpack.c.l.s4 1983009808
        %v841 = vunpack.c.0.s8 %v840
        %v842 = vlaneseq
        %v843 = vshrl.u32 %v842, 7
        %v844 = vsub.s32 %v841, %v843
        %v845 = vrot.slane %v838, %v844
        %v846 = vcombine.low %v769, %v775
        %v848 = vunpack.c.l.s4 1983009808
        %v849 = vunpack.c.0.s8 %v848
        %v850 = vlaneseq
        %v851 = vshrl.u32 %v850, 7
        %v852 = vsub.s32 %v849, %v851
        %v853 = vrot.slane %v846, %v852
        %v854 = vcombine.low %v778, %v784
        %v856 = vunpack.c.l.s4 1983009808
        %v857 = vunpack.c.0.s8 %v856
        %v858 = vlaneseq
        %v859 = vshrl.u32 %v858, 7
        %v860 = vsub.s32 %v857, %v859
        %v861 = vrot.slane %v854, %v860
        %v862 = vcombine.low %v781, %v787
        %v864 = vunpack.c.l.s4 1983009808
        %v865 = vunpack.c.0.s8 %v864
        %v866 = vlaneseq
        %v867 = vshrl.u32 %v866, 7
        %v868 = vsub.s32 %v865, %v867
        %v869 = vrot.slane %v862, %v868
        %v870 = vcombine.low %v845, %v853
        %v872 = vunpack.c.l.s4 1934713408
        %v873 = vunpack.c.0.s8 %v872
        %v874 = vlaneseq
        %v875 = vshrl.u32 %v874, 7
        %v876 = vsub.s32 %v873, %v875
        %v877 = vrot.slane %v870, %v876
        %v878 = vcombine.low %v861, %v869
        %v880 = vunpack.c.l.s4 1934713408
        %v881 = vunpack.c.0.s8 %v880
        %v882 = vlaneseq
        %v883 = vshrl.u32 %v882, 7
        %v884 = vsub.s32 %v881, %v883
        %v885 = vrot.slane %v878, %v884
        %v886 = vcombine.low %v877, %v885
        %v887 = vld [vmem:[%s4] sm:$0xff]
        %v888 = vld [vmem:[%s4 + $0x8] sm:$0xff]
        %v889 = vmul.f32 %v837, %v887
        %v890 = vmul.f32 %v886, %v888
        %v892 = vsel %vm238, %v889, 0
        %v895 = vsel %vm238, %v890, 0
        %897 = vmatprep.subr.mxu0 0.0
        %898 = vmatpush1.msra.mxu0 0.0
        %899 = vmatprep.subr.mxu0 0.0
        %900 = vmatpush1.msra.mxu0 0.0
        %901 = vmatprep.subr.mxu0 0.0
        %902 = vmatpush1.msra.mxu0 0.0
        %903 = vmatprep.subr.mxu0 0.0
        %904 = vmatpush1.msra.mxu0 0.0
        %905 = vmatprep.subr.mxu0 0.0
        %906 = vmatpush1.msra.mxu0 0.0
        %907 = vmatprep.subr.mxu0 0.0
        %908 = vmatpush1.msra.mxu0 0.0
        %909 = vmatprep.subr.mxu0 0.0
        %910 = vmatpush1.msra.mxu0 0.0
        %911 = vmatprep.subr.mxu0 0.0
        %912 = vmatpush1.msra.mxu0 0.0
        %913 = vmatprep.subr.mxu0 0.0
        %914 = vmatpush1.msra.mxu0 0.0
        %915 = vmatprep.subr.mxu0 0.0
        %916 = vmatpush1.msra.mxu0 0.0
        %917 = vmatprep.subr.mxu0 0.0
        %918 = vmatpush1.msra.mxu0 0.0
        %919 = vmatprep.subr.mxu0 0.0
        %920 = vmatpush1.msra.mxu0 0.0
        %921 = vmatprep.subr.mxu0 0.0
        %922 = vmatpush1.msra.mxu0 0.0
        %923 = vmatprep.subr.mxu0 0.0
        %924 = vmatpush1.msra.mxu0 0.0
        %925 = vmatprep.subr.mxu0 0.0
        %926 = vmatpush1.msra.mxu0 0.0
        %927 = vmatprep.subr.mxu0 %v224
        %928 = vmatpush1.msra.mxu0 %v223
        %929 = vmatprep.subr.mxu0 0.0
        %930 = vmatpush2.msra.mxu0 0.0
        %931 = vmatprep.subr.mxu0 0.0
        %932 = vmatpush2.msra.mxu0 0.0
        %933 = vmatprep.subr.mxu0 0.0
        %934 = vmatpush2.msra.mxu0 0.0
        %935 = vmatprep.subr.mxu0 0.0
        %936 = vmatpush2.msra.mxu0 0.0
        %937 = vmatprep.subr.mxu0 0.0
        %938 = vmatpush2.msra.mxu0 0.0
        %939 = vmatprep.subr.mxu0 0.0
        %940 = vmatpush2.msra.mxu0 0.0
        %941 = vmatprep.subr.mxu0 0.0
        %942 = vmatpush2.msra.mxu0 0.0
        %943 = vmatprep.subr.mxu0 0.0
        %944 = vmatpush2.msra.mxu0 0.0
        %945 = vmatprep.subr.mxu0 0.0
        %946 = vmatpush2.msra.mxu0 0.0
        %947 = vmatprep.subr.mxu0 0.0
        %948 = vmatpush2.msra.mxu0 0.0
        %949 = vmatprep.subr.mxu0 0.0
        %950 = vmatpush2.msra.mxu0 0.0
        %951 = vmatprep.subr.mxu0 0.0
        %952 = vmatpush2.msra.mxu0 0.0
        %953 = vmatprep.subr.mxu0 0.0
        %954 = vmatpush2.msra.mxu0 0.0
        %955 = vmatprep.subr.mxu0 0.0
        %956 = vmatpush2.msra.mxu0 0.0
        %957 = vmatprep.subr.mxu0 0.0
        %958 = vmatpush2.msra.mxu0 0.0
        %959 = vmatprep.subr.mxu0 0.0
        %960 = vmatpush2.msra.mxu0 0.0
        %961 = vmatprep.mubr.f32.mxu0 0.0
        %962 = vmatmul.mubr.f32.gmra.mxu0 %v892
        %v963 = vpop.f32.mrf.mxu0
        %v964 = vadd.f32 0.0, %v963
        %v965 = vpop.f32.mrf.mxu0
        %v966 = vadd.f32 0.0, %v965
        %967 = vmatprep.mubr.f32.mxu0 0.0
        %968 = vmatmul.mubr.f32.gmra.mxu0 %v895
        %v969 = vpop.f32.mrf.mxu0
        %v970 = vadd.f32 0.0, %v969
        %v971 = vpop.f32.mrf.mxu0
        %v972 = vadd.f32 0.0, %v971
        %973 = vdwg.mxu0
        %974 = vst [vmem:[%s217] sm:$0xff] %v964
        %975 = vst [vmem:[%s217 + $0x8] sm:$0xff] %v966
        %976 = vst [vmem:[%s217 + $0x10] sm:$0xff] %v970
        %977 = vst [vmem:[%s217 + $0x18] sm:$0xff] %v972
        %s978 = sand.u32 %s137, 1
        %s979 = scalar_lea.sflag [#allocation3], %s978
        %s980 = sand.u32 %s137, 1
        %s981 = smul.addr %s980, 32
        %s982 = scalar_lea.vmem [#allocation2], %s981
        // Predicated region
        $region41: #{tpu_custom_call.1} parent=39 // pred_check
          %p983 = pneg %p147
        $region42: #{tpu_custom_call.1} parent=39 // pred_check_branch
          %985 = sbr.rel (%p983) target = $region44
        $region43: #{tpu_custom_call.1} parent=39 // pred_region
          %s987 = ssub.s32 512, 512
          %988 = vsyncadd %s979, %s987
          %s989 = smul.addr %s19, 4
          %s990 = smul.addr %s989, 128
          %s991 = scalar_lea.hbm %s5, %s990
          %s992 = sshll.u32 %s982, 4
          %s993 = int_to_ptr.vmem [resolvable:$true] %s992
          %998 = dma.vmem_to_hbm [thread:$0]  %s993, 512, %s991, %s979, 256, 256, 16
        $region44: #{tpu_custom_call.1} parent=39 // pred_fallthru
          _
      $region40: #{tpu_custom_call.1} parent=5 // pred_fallthru
        _
      %p999 = scmp.le.s32.totalorder 2, %s14
      // Predicated region
      $region45: #{tpu_custom_call.1} parent=5 // pred_check
        %p1000 = pneg %p999
      $region46: #{tpu_custom_call.1} parent=5 // pred_check_branch
        %1002 = sbr.rel (%p1000) target = $region48
      $region47: #{tpu_custom_call.1} parent=5 // pred_region
        %s1003 = ssub.s32 %s14, 2
        // Predicated region
        $region49: #{tpu_custom_call.1} parent=47 // pred_check
          %p1004 = pneg %p153
        $region50: #{tpu_custom_call.1} parent=47 // pred_check_branch
          %1006 = sbr.rel (%p1004) target = $region52
        $region51: #{tpu_custom_call.1} parent=47 // pred_region
          %s1007 = sand.u32 %s138, 1
          %s1008 = scalar_lea.sflag [#allocation3], %s1007
          %s1009 = sand.u32 %s138, 1
          %s1010 = smul.addr %s1009, 32
          %s1011 = scalar_lea.vmem [#allocation2], %s1010
          %1012 = dma.done %s1008, 512
        $region52: #{tpu_custom_call.1} parent=47 // pred_fallthru
          _
      $region48: #{tpu_custom_call.1} parent=5 // pred_fallthru
        _
    $region6: #{tpu_custom_call.1} parent=1 // loop_footer
      %s18 = sadd.s32 1, %s14
    $region7: #{tpu_custom_call.1} parent=1 // loop_footer_branch
      %13 = sbr.rel target = $region3
    $region8: #{tpu_custom_call.1} parent=1 // loop_exit
      _
    %1013 = vsyncpa [#allocation3], 1
    %s1014 = scalar_lea.sflag [#allocation3], 1
    %1015 = vsyncpa %s1014, 1

</llo_original>
